<compile_context>
chip_gen: v5e
topology: v5e:2x2
jax: 0.10.0
libtpu: 0.0.40
codegen_flags: <defaults>
</compile_context>

<pallas_src>
import jax
import jax.numpy as jnp
from jax.experimental import pallas as pl
from jax.experimental.pallas import tpu as pltpu


def gmm_kernel(xt_ref, w1_ref, b1_ref, w2_ref, b2_ref, ot_ref):
    """One batch tile, batch-on-lanes layout.

    xt_ref: [D, tb]      input tile, batch on lanes
    w1_ref: [H, D]       layer-1 weight (PyTorch [out, in] layout), resident
    b1_ref: [H, 1]       layer-1 bias column, resident
    w2_ref: [K_pad, H]   layer-2 weight (rows K..K_pad-1 are zeros), resident
    b2_ref: [K_pad, 1]   layer-2 bias column (rows K..K_pad-1 are -1e30)
    ot_ref: [K_pad, tb]  softmax(logits)^T, batch on lanes (lane-dense store)
    """
    # Layer 1: h^T = tanh(W1 @ x^T + b1).  MXU: M=H, K=D, N=tb (columns full).
    ht = jnp.tanh(
        jnp.dot(w1_ref[...], xt_ref[...], preferred_element_type=jnp.float32)
        + b1_ref[...]
    )
    # Layer 2: logits^T = W2 @ h^T + b2.  MXU: M=K_pad, K=H, N=tb.
    logits = (
        jnp.dot(w2_ref[...], ht, preferred_element_type=jnp.float32)
        + b2_ref[...]
    )
    # Softmax over the class (sublane) axis == torch Softmax(dim=1) on [B, K].
    # Padded rows carry logit -1e30 -> exp == 0, so they do not perturb the
    # normalization of the real rows.
    m = jnp.max(logits, axis=0, keepdims=True)        # [1, tb]
    e = jnp.exp(logits - m)                           # [K_pad, tb]
    denom = jnp.sum(e, axis=0, keepdims=True)         # [1, tb]
    # Exact reciprocal so rows sum to ~1 (approx=True would use the EUP fast
    # path with ~1e-3 relative normalization error).
    ot_ref[...] = (e * pl.reciprocal(denom)).astype(ot_ref.dtype)


def _round_up(n, m):
    return ((n + m - 1) // m) * m


def _pick_batch_tile(B, block_b):
    """Batch (lane-axis) tile: a multiple of 128, or the full batch."""
    block_b = max(128, (block_b // 128) * 128)
    if B <= min(block_b, 1024):
        return B                      # single full-extent tile
    tb = min(block_b, _round_up(B, 128))
    # v7x megacore: keep >= 2 grid steps so both TensorCores get work.
    tb = min(tb, _round_up((B + 1) // 2, 128))
    return tb


def gmm_forward(x, w1, b1, w2, b2, *, block_b=4096):
    """Fused GMM forward: softmax(tanh(x @ W1^T + b1) @ W2^T + b2, dim=1).

    x : [B, D] input.
    w1: [H, D], b1: [H]   -- PyTorch nn.Linear layout (out, in).
    w2: [K, H], b2: [K]
    block_b: batch tile size (sweep 2048-8192 for very large B).
    Returns [B, K] float32 mixture responsibilities.
    """
    B, D = x.shape
    H, D1 = w1.shape
    K, H1 = w2.shape
    assert D1 == D and H1 == H and b1.shape == (H,) and b2.shape == (K,)

    # One bandwidth-bound transpose puts the batch on lanes; the kernel is
    # compute-bound at these shapes, so this layout plumbing pays for itself.
    # (If the producer can emit feature-major x directly, it disappears.)
    x_t = x.T                                              # [D, B]

    w1 = w1.astype(jnp.float32)
    b1c = b1.astype(jnp.float32).reshape(H, 1)

    # Pad the class axis to a sublane multiple: zero weight rows + -1e30 bias
    # rows contribute exactly zero softmax mass and are sliced off below.
    K_pad = _round_up(max(K, 8), 8)
    w2p = jnp.pad(w2.astype(jnp.float32), ((0, K_pad - K), (0, 0)))
    b2c = jnp.pad(
        b2.astype(jnp.float32).reshape(K, 1),
        ((0, K_pad - K), (0, 0)),
        constant_values=-1e30,
    )

    tb = _pick_batch_tile(B, block_b)
    grid = (pl.cdiv(B, tb),)

    out_t = pl.pallas_call(
        gmm_kernel,
        out_shape=jax.ShapeDtypeStruct((K_pad, B), jnp.float32),
        grid_spec=pltpu.PrefetchScalarGridSpec(
            num_scalar_prefetch=0,
            grid=grid,
            in_specs=[
                pl.BlockSpec((D, tb), lambda i: (0, i)),      # x^T: batch-tiled
                pl.BlockSpec((H, D), lambda i: (0, 0)),       # W1: resident
                pl.BlockSpec((H, 1), lambda i: (0, 0)),       # b1: resident
                pl.BlockSpec((K_pad, H), lambda i: (0, 0)),   # W2: resident
                pl.BlockSpec((K_pad, 1), lambda i: (0, 0)),   # b2: resident
            ],
            out_specs=pl.BlockSpec((K_pad, tb), lambda i: (0, i)),
        ),
        compiler_params=pltpu.CompilerParams(
            dimension_semantics=("parallel",),   # batch tiles are independent
        ),
    )(x_t, w1, b1c, w2p, b2c)

    return out_t[:K].T                                     # [B, K]


def reference_forward(x, w1, b1, w2, b2):
    h = jnp.tanh(x @ w1.T + b1)
    logits = h @ w2.T + b2
    return jax.nn.softmax(logits, axis=-1)


if __name__ == "__main__":
    B, D, H, K = 8, 32, 16, 4

    key = jax.random.PRNGKey(0)
    kx, kw1, kb1, kw2, kb2, kx2 = jax.random.split(key, 6)

    x = jax.random.normal(kx, (B, D), dtype=jnp.float32)
    # Deterministic parameter init (roughly nn.Linear uniform scale),
    # in PyTorch [out, in] layout.
    lim1 = 1.0 / (D ** 0.5)
    lim2 = 1.0 / (H ** 0.5)
    w1 = jax.random.uniform(kw1, (H, D), jnp.float32, -lim1, lim1)
    b1 = jax.random.uniform(kb1, (H,), jnp.float32, -lim1, lim1)
    w2 = jax.random.uniform(kw2, (K, H), jnp.float32, -lim2, lim2)
    b2 = jax.random.uniform(kb2, (K,), jnp.float32, -lim2, lim2)

    # Single-tile path (small batch).
    out = jax.block_until_ready(gmm_forward(x, w1, b1, w2, b2))
    ref = reference_forward(x, w1, b1, w2, b2)
    assert out.shape == (B, K)
    assert jnp.allclose(out, ref, atol=5e-3, rtol=5e-3)
    # Exact-reciprocal softmax: rows normalize.
    assert jnp.allclose(out.sum(axis=-1), 1.0, atol=1e-4)

    # Multi-tile path: a small block_b forces a 3-step grid over the batch
    # (lane) axis, exercising the tiled BlockSpec and the >=2-step layout
    # that feeds both TensorCores on v7x.
    B2 = 384
    x2 = jax.random.normal(kx2, (B2, D), dtype=jnp.float32)
    out2 = jax.block_until_ready(gmm_forward(x2, w1, b1, w2, b2, block_b=128))
    ref2 = reference_forward(x2, w1, b1, w2, b2)
    assert out2.shape == (B2, K)
    assert jnp.allclose(out2, ref2, atol=5e-3, rtol=5e-3)

    print("KERNEL_OK")
</pallas_src>

<mosaic_0001>
module attributes {stable_mosaic.version = 11 : i64} {
  func.func @gmm_kernel(%arg0: i32, %arg1: memref<32x8xf32, #tpu.memory_space<vmem>>, %arg2: memref<16x32xf32, #tpu.memory_space<vmem>>, %arg3: memref<16x1xf32, #tpu.memory_space<vmem>>, %arg4: memref<8x16xf32, #tpu.memory_space<vmem>>, %arg5: memref<8x1xf32, #tpu.memory_space<vmem>>, %arg6: memref<8x8xf32, #tpu.memory_space<vmem>>) attributes {dimension_semantics = [#tpu.dimension_semantics<parallel>], iteration_bounds = array<i64: 1>, scalar_prefetch = 0 : i64, scratch_operands = 0 : i64, tpu.core_type = #tpu.core_type<tc>, window_params = [{transform_indices = @transform_0, window_bounds = array<i64: 32, 8>}, {pipeline_mode = #tpu.pipeline_mode<synchronous>, transform_indices = @transform_1, window_bounds = array<i64: 16, 32>}, {pipeline_mode = #tpu.pipeline_mode<synchronous>, transform_indices = @transform_2, window_bounds = array<i64: 16, 1>}, {pipeline_mode = #tpu.pipeline_mode<synchronous>, transform_indices = @transform_3, window_bounds = array<i64: 8, 16>}, {pipeline_mode = #tpu.pipeline_mode<synchronous>, transform_indices = @transform_4, window_bounds = array<i64: 8, 1>}, {transform_indices = @transform_5, window_bounds = array<i64: 8, 8>}]} {
    %c0 = arith.constant 0 : index
    %c0_0 = arith.constant 0 : index
    %0 = vector.load %arg2[%c0, %c0_0] : memref<16x32xf32, #tpu.memory_space<vmem>>, vector<16x32xf32>
    %c0_1 = arith.constant 0 : index
    %c0_2 = arith.constant 0 : index
    %1 = vector.load %arg1[%c0_1, %c0_2] : memref<32x8xf32, #tpu.memory_space<vmem>>, vector<32x8xf32>
    %cst = arith.constant dense<0.000000e+00> : vector<16x8xf32>
    %2 = tpu.matmul %0, %1, %cst {dimension_numbers = #tpu.dot_dimension_numbers<[1], [0], [0], [1], [0, 0, 1, 1], [], []>} : vector<16x32xf32>, vector<32x8xf32>, vector<16x8xf32> -> vector<16x8xf32>
    %c0_3 = arith.constant 0 : index
    %c0_4 = arith.constant 0 : index
    %3 = vector.load %arg3[%c0_3, %c0_4] : memref<16x1xf32, #tpu.memory_space<vmem>>, vector<16x1xf32>
    %4 = vector.broadcast %3 : vector<16x1xf32> to vector<16x8xf32>
    %5 = arith.addf %2, %4 : vector<16x8xf32>
    %6 = math.tanh %5 : vector<16x8xf32>
    %c0_5 = arith.constant 0 : index
    %c0_6 = arith.constant 0 : index
    %7 = vector.load %arg4[%c0_5, %c0_6] : memref<8x16xf32, #tpu.memory_space<vmem>>, vector<8x16xf32>
    %cst_7 = arith.constant dense<0.000000e+00> : vector<8x8xf32>
    %8 = tpu.matmul %7, %6, %cst_7 {dimension_numbers = #tpu.dot_dimension_numbers<[1], [0], [0], [1], [0, 0, 1, 1], [], []>} : vector<8x16xf32>, vector<16x8xf32>, vector<8x8xf32> -> vector<8x8xf32>
    %c0_8 = arith.constant 0 : index
    %c0_9 = arith.constant 0 : index
    %9 = vector.load %arg5[%c0_8, %c0_9] : memref<8x1xf32, #tpu.memory_space<vmem>>, vector<8x1xf32>
    %10 = vector.broadcast %9 : vector<8x1xf32> to vector<8x8xf32>
    %11 = arith.addf %8, %10 : vector<8x8xf32>
    %cst_10 = arith.constant dense<0xFF800000> : vector<8xf32>
    %12 = vector.multi_reduction <maximumf>, %11, %cst_10 [0] : vector<8x8xf32> to vector<8xf32>
    %13 = vector.shape_cast %12 : vector<8xf32> to vector<1x8xf32>
    %14 = vector.broadcast %13 : vector<1x8xf32> to vector<8x8xf32>
    %15 = arith.subf %11, %14 : vector<8x8xf32>
    %16 = math.exp %15 : vector<8x8xf32>
    %cst_11 = arith.constant dense<0.000000e+00> : vector<8xf32>
    %17 = vector.multi_reduction <add>, %16, %cst_11 [0] : vector<8x8xf32> to vector<8xf32>
    %18 = vector.shape_cast %17 : vector<8xf32> to vector<1x8xf32>
    %19 = tpu.reciprocal %18 : vector<1x8xf32> -> vector<1x8xf32>
    %20 = vector.broadcast %19 : vector<1x8xf32> to vector<8x8xf32>
    %21 = arith.mulf %16, %20 : vector<8x8xf32>
    %c0_12 = arith.constant 0 : index
    %c0_13 = arith.constant 0 : index
    %22 = vector.load %arg6[%c0_12, %c0_13] : memref<8x8xf32, #tpu.memory_space<vmem>>, vector<8x8xf32>
    tpu.vector_store %arg6[%c0_12, %c0_13], %21 {strides = array<i32>} : memref<8x8xf32, #tpu.memory_space<vmem>>, vector<8x8xf32>,
    return
  }
  func.func @transform_0(%arg0: i32) -> (i32, i32) {
    %c0_i32 = arith.constant 0 : i32
    %c0_i32_0 = arith.constant 0 : i32
    return %c0_i32, %arg0 : i32, i32
  }
  func.func @transform_1(%arg0: i32) -> (i32, i32) {
    %c0_i32 = arith.constant 0 : i32
    %c0_i32_0 = arith.constant 0 : i32
    %c0_i32_1 = arith.constant 0 : i32
    return %c0_i32, %c0_i32_0 : i32, i32
  }
  func.func @transform_2(%arg0: i32) -> (i32, i32) {
    %c0_i32 = arith.constant 0 : i32
    %c0_i32_0 = arith.constant 0 : i32
    %c0_i32_1 = arith.constant 0 : i32
    return %c0_i32, %c0_i32_0 : i32, i32
  }
  func.func @transform_3(%arg0: i32) -> (i32, i32) {
    %c0_i32 = arith.constant 0 : i32
    %c0_i32_0 = arith.constant 0 : i32
    %c0_i32_1 = arith.constant 0 : i32
    return %c0_i32, %c0_i32_0 : i32, i32
  }
  func.func @transform_4(%arg0: i32) -> (i32, i32) {
    %c0_i32 = arith.constant 0 : i32
    %c0_i32_0 = arith.constant 0 : i32
    %c0_i32_1 = arith.constant 0 : i32
    return %c0_i32, %c0_i32_0 : i32, i32
  }
  func.func @transform_5(%arg0: i32) -> (i32, i32) {
    %c0_i32 = arith.constant 0 : i32
    %c0_i32_0 = arith.constant 0 : i32
    return %c0_i32, %arg0 : i32, i32
  }
}

</mosaic_0001>

<llo_original>
// kernel: tpu_custom_call.1
$region0: #{tpu_custom_call.1}
  #allocation0 [shape = 'u32[]', space=smem, size = 0x4, offset = 0x4, fixed_abs, tag = 'smem constant byte address 0x4 - core index']
  #allocation1 [shape = 'u32[72,128]{1,0:T(1,128)}', space=vmem, size = 0x9000, scoped, tag = 'internal scratch']
  %s0 = inlined_call_operand.vmem [shape: f32[32,8], index: 0, kind: input, shape index: {}]
  %s1 = inlined_call_operand.vmem [shape: f32[16,32], index: 1, kind: input, shape index: {}]
  %s2 = inlined_call_operand.vmem [shape: f32[16,1], index: 2, kind: input, shape index: {}]
  %s3 = inlined_call_operand.vmem [shape: f32[8,16], index: 3, kind: input, shape index: {}]
  %s4 = inlined_call_operand.vmem [shape: f32[8,1], index: 4, kind: input, shape index: {}]
  %s5 = inlined_call_operand.hbm [shape: f32[8,8], index: 5, kind: output, shape index: {}]
  %s6 = sld [smem:[#allocation0]]
  $region30: #{tpu_custom_call.1} parent=0
    _
  %s8 = ssub.s32 1, %s6
  %s9 = scalar_select 0, %s8, %s6
  $region1: #{tpu_custom_call.1} parent=0
    #allocation2 [shape = 'u8[4096]{0}', space=vmem, size = 0x1000, scoped, tag = 'output window, operand 0, single buffered']
    #allocation3 [shape = 's32[1]{0}', space=sflag, size = 0x4, scoped, tag = 'scoped memory for tpu_custom_call.1']
    %10 = vsyncpa [#allocation3], 0
    // Predicated region
    $region2: #{tpu_custom_call.1} parent=1 // pred_check
      _
    $region3: #{tpu_custom_call.1} parent=1 // pred_check_branch
      %12 = sbr.rel (0) target = $region5
    $region4: #{tpu_custom_call.1} parent=1 // pred_region
      _
    $region5: #{tpu_custom_call.1} parent=1 // pred_fallthru
      _
    // Predicated region
    $region6: #{tpu_custom_call.1} parent=1 // pred_check
      _
    $region7: #{tpu_custom_call.1} parent=1 // pred_check_branch
      %14 = sbr.rel (0) target = $region9
    $region8: #{tpu_custom_call.1} parent=1 // pred_region
      _
    $region9: #{tpu_custom_call.1} parent=1 // pred_fallthru
      _
    // Predicated region
    $region10: #{tpu_custom_call.1} parent=1 // pred_check
      _
    $region11: #{tpu_custom_call.1} parent=1 // pred_check_branch
      %16 = sbr.rel (0) target = $region13
    $region12: #{tpu_custom_call.1} parent=1 // pred_region
      _
    $region13: #{tpu_custom_call.1} parent=1 // pred_fallthru
      _
    // Predicated region
    $region14: #{tpu_custom_call.1} parent=1 // pred_check
      _
    $region15: #{tpu_custom_call.1} parent=1 // pred_check_branch
      %18 = sbr.rel (0) target = $region17
    $region16: #{tpu_custom_call.1} parent=1 // pred_region
      _
    $region17: #{tpu_custom_call.1} parent=1 // pred_fallthru
      _
    // Predicated region
    $region18: #{tpu_custom_call.1} parent=1 // pred_check
      _
    $region19: #{tpu_custom_call.1} parent=1 // pred_check_branch
      %20 = sbr.rel (0) target = $region21
    $region20: #{tpu_custom_call.1} parent=1 // pred_region
      _
    $region21: #{tpu_custom_call.1} parent=1 // pred_fallthru
      _
    %v21 = vld [vmem:[%s1] sm:$0xff]
    %v22 = vld [vmem:[%s1 + $0x8] sm:$0xff]
    %v23 = vld [vmem:[%s0] sm:$0xff]
    %v24 = vld [vmem:[%s0 + $0x8] sm:$0xff]
    %v25 = vld [vmem:[%s0 + $0x10] sm:$0xff]
    %v26 = vld [vmem:[%s0 + $0x18] sm:$0xff]
    %v27 = vld [vmem:[%s2] sm:$0xff]
    %v28 = vld [vmem:[%s2 + $0x8] sm:$0xff]
    %30 = vset.pattern.permute.xlu0 0
    %31 = vperm.xlu0 %30, %v27
    %v32 = vpop.permute.xlu0 %31
    %35 = vset.pattern.permute.xlu0 0
    %36 = vperm.xlu0 %35, %v28
    %v37 = vpop.permute.xlu0 %36
    %vm39 = vcmask 261120
    %v41 = vsel %vm39, %v21, 0
    %v44 = vsel %vm39, %v22, 0
    %46 = vmatpush.msra.mxu0 0.0
    %47 = vmatpush.msra.mxu0 0.0
    %48 = vmatpush.msra.mxu0 0.0
    %49 = vmatpush.msra.mxu0 0.0
    %50 = vmatpush.msra.mxu0 0.0
    %51 = vmatpush.msra.mxu0 0.0
    %52 = vmatpush.msra.mxu0 0.0
    %53 = vmatpush.msra.mxu0 0.0
    %54 = vmatpush.msra.mxu0 0.0
    %55 = vmatpush.msra.mxu0 0.0
    %56 = vmatpush.msra.mxu0 0.0
    %57 = vmatpush.msra.mxu0 0.0
    %58 = vmatpush.msra.mxu0 %v26
    %59 = vmatpush.msra.mxu0 %v25
    %60 = vmatpush.msra.mxu0 %v24
    %61 = vmatpush.msra.mxu0 %v23
    %62 = vmatmul.f32.gmra.mxu0 %v41
    %v63 = vpop.f32.mrf.mxu0
    %v64 = vadd.f32 %v32, %v63
    %65 = vmatmul.f32.gmra.mxu0 %v44
    %v66 = vpop.f32.mrf.mxu0
    %v67 = vadd.f32 %v37, %v66
    %68 = vdwg.mxu0
    %v69 = vtanh.pop %v64
    %v70 = vtanh.pop %v67
    %v71 = vld [vmem:[%s3] sm:$0xff]
    %v72 = vld [vmem:[%s4] sm:$0xff]
    %74 = vset.pattern.permute.xlu0 0
    %75 = vperm.xlu0 %74, %v72
    %v76 = vpop.permute.xlu0 %75
    %vm78 = vcmask 130048
    %v80 = vsel %vm78, %v71, 0
    %82 = vmatpush.msra.mxu0 0.0
    %83 = vmatpush.msra.mxu0 0.0
    %84 = vmatpush.msra.mxu0 0.0
    %85 = vmatpush.msra.mxu0 0.0
    %86 = vmatpush.msra.mxu0 0.0
    %87 = vmatpush.msra.mxu0 0.0
    %88 = vmatpush.msra.mxu0 0.0
    %89 = vmatpush.msra.mxu0 0.0
    %90 = vmatpush.msra.mxu0 0.0
    %91 = vmatpush.msra.mxu0 0.0
    %92 = vmatpush.msra.mxu0 0.0
    %93 = vmatpush.msra.mxu0 0.0
    %94 = vmatpush.msra.mxu0 0.0
    %95 = vmatpush.msra.mxu0 0.0
    %96 = vmatpush.msra.mxu0 %v70
    %97 = vmatpush.msra.mxu0 %v69
    %98 = vmatmul.f32.gmra.mxu0 %v80
    %v99 = vpop.f32.mrf.mxu0
    %v100 = vadd.f32 %v76, %v99
    %101 = vdwg.mxu0
    %vm102 = vcmask 64512
    %v103 = vsel %vm102, %v100, -inf
    %v104 = vrot.slane %v103, 4
    %v105 = vmax.f32 %v103, %v104
    %v106 = vrot.slane %v105, 2
    %v107 = vmax.f32 %v105, %v106
    %v108 = vrot.slane %v107, 1
    %v109 = vmax.f32 %v107, %v108
    %v110 = vsub.f32 %v100, %v109
    %v111 = vmul.f32 %v110, 1.442695
    %v112 = vpow.pop %v111
    %v113 = vsel %vm102, %v112, 0.0
    %v114 = vrot.slane %v113, 4
    %v115 = vadd.f32 %v113, %v114
    %v116 = vrot.slane %v115, 2
    %v117 = vadd.f32 %v115, %v116
    %v118 = vrot.slane %v117, 1
    %v119 = vadd.f32 %v117, %v118
    %v120 = vrcp.pop %v119
    %v121 = vmul.f32 %v119, %v120
    %v122 = vsub.f32 1.0, %v121
    %v123 = vmul.f32 %v120, %v122
    %v124 = vadd.f32 %v120, %v123
    %vm125 = vweird.f32 %v119
    %vm126 = vweird.f32 %v120
    %vm127 = vmor %vm125, %vm126
    %v128 = vsel %vm127, %v120, %v124
    %v129 = vand.u32 2147483647, %v119
    %vm130 = vcmp.eq.f32.partialorder %v129, 8.507059e+37
    %v131 = vand.u32 %v119, 2147483648
    %v132 = vor.u32 1.1754944e-38, %v131
    %v133 = vsel %vm130, %v132, %v128
    %v134 = vmul.f32 %v112, %v133
    %135 = vst.msk [vmem:[#allocation2] sm:$0xff] %vm102, %v134
    // Predicated region
    $region22: #{tpu_custom_call.1} parent=1 // pred_check
      _
    $region23: #{tpu_custom_call.1} parent=1 // pred_check_branch
      %137 = sbr.rel (0) target = $region25
    $region24: #{tpu_custom_call.1} parent=1 // pred_region
      %139 = vsyncadd [#allocation3], 0
      %s141 = sshll.u32 [#allocation2], 4
      %s142 = int_to_ptr.vmem [resolvable:$true] %s141
      %s143 = sshll.u32 %s5, 4
      %s144 = int_to_ptr.hbm [resolvable:$true] %s143
      %146 = dma.vmem_to_hbm [thread:$0]  %s142, 128, %s144, [#allocation3]
    $region25: #{tpu_custom_call.1} parent=1 // pred_fallthru
      _
    // Predicated region
    $region26: #{tpu_custom_call.1} parent=1 // pred_check
      _
    $region27: #{tpu_custom_call.1} parent=1 // pred_check_branch
      %148 = sbr.rel (0) target = $region29
    $region28: #{tpu_custom_call.1} parent=1 // pred_region
      %150 = dma.done [#allocation3], 128
    $region29: #{tpu_custom_call.1} parent=1 // pred_fallthru
      _
    %151 = vsyncpa [#allocation3], 1

</llo_original>
